<compile_context>
chip_gen: v6e
topology: v6e:2x2x1
jax: 0.10.0
libtpu: 0.0.40
codegen_flags: <defaults>
</compile_context>

<pallas_src>
import math

import jax
import jax.numpy as jnp
from jax.experimental import pallas as pl
from jax.experimental.pallas import tpu as pltpu

EPS = 1e-5  # nn.LayerNorm default


def _hardswish(z):
    # torch.nn.Hardswish: z * relu6(z + 3) / 6   (reference path only)
    return z * jnp.clip(z + 3.0, 0.0, 6.0) * (1.0 / 6.0)


def _ln_slices(x, gamma, beta, n_inv):
    """nn.LayerNorm((S, F)) applied independently to every leading slice of a
    (TB, S, F) block.  One-pass stats [R9]: sum(x) and sum(x*x) have no data
    dependence on each other so their reduce chains overlap; biased variance,
    eps=1e-5, elementwise (S, F) affine — matches PyTorch."""
    s1 = jnp.sum(jnp.sum(x, axis=-1, keepdims=True), axis=-2, keepdims=True)
    s2 = jnp.sum(jnp.sum(x * x, axis=-1, keepdims=True), axis=-2, keepdims=True)
    mu = s1 * n_inv
    var = s2 * n_inv - mu * mu
    return (x - mu) * jax.lax.rsqrt(var + EPS) * gamma + beta


def itm_kernel(x_ref, g1_ref, b1_ref, w1_ref, w2s_ref, g2_ref, b2_ref,
               m1bd_ref, m2st_ref, wfc_ref, bfc_ref, out_ref):
    TB, S, F = x_ref.shape
    n_inv = 1.0 / (S * F)
    x = x_ref[...]                                               # (TB, S, F)

    # ---------------- IndicatorMixing ----------------
    h = _ln_slices(x, g1_ref[...], b1_ref[...], n_inv)           # (TB, S, F)
    h2d = h.reshape(TB * S, F)                                   # layout-preserving (minor dim kept)
    z = jnp.dot(h2d, w1_ref[...], preferred_element_type=jnp.float32)   # (TB*S, H)  [R1]
    z = z * jnp.clip(z + 3.0, 0.0, 6.0)      # hardswish numerator; 1/6 folded into W2s [R10]
    z = jnp.dot(z, w2s_ref[...], preferred_element_type=jnp.float32)    # (TB*S, F)
    x1_2d = x.reshape(TB * S, F) + z                             # residual
    x1 = x1_2d.reshape(TB, S, F)

    # ---------------- TimeMixing ----------------
    h2 = _ln_slices(x1, g2_ref[...], b2_ref[...], n_inv)         # (TB, S, F)
    # Causal mix 1 as ONE 2-D MXU matmul with stationary weights [R7]:
    #   u[b*S+s, f] = sum_t M1[s, t] * h2[b, t, f]   via block-diag kron(I_TB, M1).
    u = jnp.dot(m1bd_ref[...], h2.reshape(TB * S, F),
                preferred_element_type=jnp.float32)              # (TB*S, F)
    u = u * jnp.clip(u + 3.0, 0.0, 6.0)      # hardswish numerator; 1/6 folded into M2sT [R10]

    # ---------------- fc folded through the second causal mix ----------------
    #   y = x2 @ wfc^T + bfc,   x2 = x1 + M2 @ hardswish(u)
    #     = x1.wfc + (M2/6) @ ((u * relu6(u+3)).wfc) + bfc          (exact algebra)
    wfc = wfc_ref[...]                                           # (1, F)
    # F-contractions kept as VPU mul + tiny lane reduce: an MXU (., 1) mat-vec
    # result would need a sublane->lane relayout to reach the (TB, S) lane-dense
    # store; the reduce over F is small and overlaps the M2 matmul.
    uw = jnp.sum(u.reshape(TB, S, F) * wfc, axis=-1)             # (TB, S)
    x1w = jnp.sum(x1 * wfc, axis=-1)                             # (TB, S)
    vw = jnp.dot(uw, m2st_ref[...], preferred_element_type=jnp.float32)  # (TB,S)@(S,S) [R7]
    out_ref[...] = x1w + vw + bfc_ref[0]                         # (TB, S) lane-dense store [R2]


def prepare_kernel_params(params, tb):
    """One-time parameter transform (not per-call wrapper work) [R10]."""
    m1 = params['M1']
    return dict(
        g1=params['g1'], b1=params['b1'], g2=params['g2'], b2=params['b2'],
        W1=params['W1'],
        W2s=params['W2'] * (1.0 / 6.0),                   # fold hardswish /6
        M1bd=jnp.kron(jnp.eye(tb, dtype=m1.dtype), m1),   # (tb*S, tb*S) block-diag mix-1
        M2sT=(params['M2'] * (1.0 / 6.0)).T,              # fold /6, pre-transpose for uw @ M2sT
        wfc=params['wfc'],                                # (1, F)
        bfc=params['bfc'].reshape(1),                     # (1,) scalar -> SMEM
    )


def indicator_time_mixing(x, kp, *, tb=None):
    B, S, F = x.shape
    if tb is None:
        tb = B                       # fold the whole (small) batch into one step [R1]
    assert B % tb == 0, "batch tile must divide batch"
    nb = B // tb
    H = kp['W1'].shape[1]
    assert kp['M1bd'].shape == (tb * S, tb * S), "prepare_kernel_params tb mismatch"

    def bytes_f32(*shapes):
        return sum(4 * math.prod(s) for s in shapes)

    streamed = bytes_f32((tb, S, F), (tb, S))             # double-buffered per step
    resident = bytes_f32((S, F), (S, F), (S, F), (S, F), (F, H), (H, F),
                         (tb * S, tb * S), (S, S), (1, F))
    vmem_limit = int(min(max(4 * (2 * streamed + 2 * resident), 4 << 20), 48 << 20))  # [R3/R5]

    const = lambda b: (0, 0)
    in_specs = [
        pl.BlockSpec((tb, S, F), lambda b: (b, 0, 0)),    # x: one batch block per step [R1]
        pl.BlockSpec((S, F), const),                      # g1 (LN1 weight)
        pl.BlockSpec((S, F), const),                      # b1 (LN1 bias)
        pl.BlockSpec((F, H), const),                      # W1
        pl.BlockSpec((H, F), const),                      # W2 / 6
        pl.BlockSpec((S, F), const),                      # g2 (LN2 weight)
        pl.BlockSpec((S, F), const),                      # b2 (LN2 bias)
        pl.BlockSpec((tb * S, tb * S), const),            # kron(I_tb, M1)
        pl.BlockSpec((S, S), const),                      # (M2 / 6)^T
        pl.BlockSpec((1, F), const),                      # wfc
        pl.BlockSpec(memory_space=pltpu.MemorySpace.SMEM),  # bfc scalar [R10]
    ]
    # TODO(synk): at larger shapes, single-buffer the constant weight specs via
    # pipeline_mode=pl.Buffered(1) [R3] and replace kron(I_tb, M1) with the
    # (S, tb*F) lane-packed layout / triangular S-tiling of M1/M2 [R4/R7].

    sem = ("parallel",) if nb >= 8 else ("arbitrary",)    # [R6]

    return pl.pallas_call(
        itm_kernel,
        out_shape=jax.ShapeDtypeStruct((B, S), jnp.float32),   # no trailing 1, no squeeze [R2]
        grid=(nb,),
        in_specs=in_specs,
        out_specs=pl.BlockSpec((tb, S), lambda b: (b, 0)),
        compiler_params=pltpu.CompilerParams(
            dimension_semantics=sem, vmem_limit_bytes=vmem_limit),
    )(x, kp['g1'], kp['b1'], kp['W1'], kp['W2s'], kp['g2'], kp['b2'],
      kp['M1bd'], kp['M2sT'], kp['wfc'], kp['bfc'])


def init_params(key, S, F, H):
    ks = jax.random.split(key, 6)
    # IndicatorMixing: W1 (F,H), W2 (H,F) ~ randn; LayerNorm affine = (ones, zeros)
    W1 = jax.random.normal(ks[0], (F, H), jnp.float32)
    W2 = jax.random.normal(ks[1], (H, F), jnp.float32)
    # TimeMixing: U1[i], U2[i] ~ 0.01*randn(1, i+1) -> dense lower-triangular (S, S)
    tri = jnp.tril(jnp.ones((S, S), jnp.float32))
    M1 = jax.random.normal(ks[2], (S, S), jnp.float32) * 0.01 * tri
    M2 = jax.random.normal(ks[3], (S, S), jnp.float32) * 0.01 * tri
    g1 = jnp.ones((S, F), jnp.float32)
    b1 = jnp.zeros((S, F), jnp.float32)
    g2 = jnp.ones((S, F), jnp.float32)
    b2 = jnp.zeros((S, F), jnp.float32)
    # fc = nn.Linear(F, 1): uniform(-1/sqrt(F), 1/sqrt(F)) init
    bound = 1.0 / (F ** 0.5)
    wfc = jax.random.uniform(ks[4], (1, F), jnp.float32, -bound, bound)
    bfc = jax.random.uniform(ks[5], (1, 1), jnp.float32, -bound, bound)
    return dict(W1=W1, W2=W2, M1=M1, M2=M2, g1=g1, b1=b1, g2=g2, b2=b2,
                wfc=wfc, bfc=bfc)


def reference(x, p):
    # Pure-JAX reference mirroring the PyTorch forward (unfused fc, unfolded /6).
    def ln(t, g, b):
        mu = jnp.mean(t, axis=(1, 2), keepdims=True)
        var = jnp.mean((t - mu) ** 2, axis=(1, 2), keepdims=True)
        return (t - mu) / jnp.sqrt(var + EPS) * g + b

    h = ln(x, p['g1'], p['b1'])
    h = _hardswish(h @ p['W1']) @ p['W2']
    x1 = x + h
    h2 = ln(x1, p['g2'], p['b2'])
    u = _hardswish(jnp.einsum('st,btf->bsf', p['M1'], h2))
    v = jnp.einsum('st,btf->bsf', p['M2'], u)
    x2 = x1 + v
    y = jnp.einsum('bsf,f->bs', x2, p['wfc'][0]) + p['bfc'][0, 0]
    return y


if __name__ == "__main__":
    B, S, F, H = 2, 8, 4, 32  # batch, seq_len, feature_dim, hidden_dim
    key = jax.random.PRNGKey(0)
    kx, kp = jax.random.split(key)
    x = jax.random.normal(kx, (B, S, F), jnp.float32)
    params = init_params(kp, S, F, H)
    kparams = prepare_kernel_params(params, tb=B)

    out = jax.block_until_ready(indicator_time_mixing(x, kparams, tb=B))
    ref = reference(x, params)

    assert out.shape == (B, S), out.shape
    assert jnp.allclose(out, ref, atol=1e-4, rtol=1e-4), float(jnp.max(jnp.abs(out - ref)))
    print("KERNEL_OK")
</pallas_src>

<mosaic_0001>
module attributes {stable_mosaic.version = 11 : i64} {
  func.func @itm_kernel(%arg0: i32, %arg1: memref<2x8x4xf32, #tpu.memory_space<vmem>>, %arg2: memref<8x4xf32, #tpu.memory_space<vmem>>, %arg3: memref<8x4xf32, #tpu.memory_space<vmem>>, %arg4: memref<4x32xf32, #tpu.memory_space<vmem>>, %arg5: memref<32x4xf32, #tpu.memory_space<vmem>>, %arg6: memref<8x4xf32, #tpu.memory_space<vmem>>, %arg7: memref<8x4xf32, #tpu.memory_space<vmem>>, %arg8: memref<16x16xf32, #tpu.memory_space<vmem>>, %arg9: memref<8x8xf32, #tpu.memory_space<vmem>>, %arg10: memref<1x4xf32, #tpu.memory_space<vmem>>, %arg11: memref<1xf32, #tpu.memory_space<smem>>, %arg12: memref<2x8xf32, #tpu.memory_space<vmem>>) attributes {dimension_semantics = [#tpu.dimension_semantics<arbitrary>], iteration_bounds = array<i64: 1>, scalar_prefetch = 0 : i64, scratch_operands = 0 : i64, tpu.core_type = #tpu.core_type<tc>, window_params = [{transform_indices = @transform_0, window_bounds = array<i64: 2, 8, 4>}, {pipeline_mode = #tpu.pipeline_mode<synchronous>, transform_indices = @transform_1, window_bounds = array<i64: 8, 4>}, {pipeline_mode = #tpu.pipeline_mode<synchronous>, transform_indices = @transform_2, window_bounds = array<i64: 8, 4>}, {pipeline_mode = #tpu.pipeline_mode<synchronous>, transform_indices = @transform_3, window_bounds = array<i64: 4, 32>}, {pipeline_mode = #tpu.pipeline_mode<synchronous>, transform_indices = @transform_4, window_bounds = array<i64: 32, 4>}, {pipeline_mode = #tpu.pipeline_mode<synchronous>, transform_indices = @transform_5, window_bounds = array<i64: 8, 4>}, {pipeline_mode = #tpu.pipeline_mode<synchronous>, transform_indices = @transform_6, window_bounds = array<i64: 8, 4>}, {pipeline_mode = #tpu.pipeline_mode<synchronous>, transform_indices = @transform_7, window_bounds = array<i64: 16, 16>}, {pipeline_mode = #tpu.pipeline_mode<synchronous>, transform_indices = @transform_8, window_bounds = array<i64: 8, 8>}, {pipeline_mode = #tpu.pipeline_mode<synchronous>, transform_indices = @transform_9, window_bounds = array<i64: 1, 4>}, {transform_indices = @transform_10, window_bounds = array<i64: 1>}, {transform_indices = @transform_11, window_bounds = array<i64: 2, 8>}]} {
    %c0 = arith.constant 0 : index
    %c0_0 = arith.constant 0 : index
    %c0_1 = arith.constant 0 : index
    %0 = vector.load %arg1[%c0, %c0_0, %c0_1] : memref<2x8x4xf32, #tpu.memory_space<vmem>>, vector<2x8x4xf32>
    %c0_2 = arith.constant 0 : index
    %c0_3 = arith.constant 0 : index
    %1 = vector.load %arg2[%c0_2, %c0_3] : memref<8x4xf32, #tpu.memory_space<vmem>>, vector<8x4xf32>
    %c0_4 = arith.constant 0 : index
    %c0_5 = arith.constant 0 : index
    %2 = vector.load %arg3[%c0_4, %c0_5] : memref<8x4xf32, #tpu.memory_space<vmem>>, vector<8x4xf32>
    %cst = arith.constant dense<0.000000e+00> : vector<2x8xf32>
    %3 = vector.multi_reduction <add>, %0, %cst [2] : vector<2x8x4xf32> to vector<2x8xf32>
    %4 = vector.shape_cast %3 : vector<2x8xf32> to vector<2x8x1xf32>
    %cst_6 = arith.constant dense<0.000000e+00> : vector<2x1xf32>
    %5 = vector.multi_reduction <add>, %4, %cst_6 [1] : vector<2x8x1xf32> to vector<2x1xf32>
    %6 = vector.shape_cast %5 : vector<2x1xf32> to vector<2x1x1xf32>
    %7 = arith.mulf %0, %0 : vector<2x8x4xf32>
    %cst_7 = arith.constant dense<0.000000e+00> : vector<2x8xf32>
    %8 = vector.multi_reduction <add>, %7, %cst_7 [2] : vector<2x8x4xf32> to vector<2x8xf32>
    %9 = vector.shape_cast %8 : vector<2x8xf32> to vector<2x8x1xf32>
    %cst_8 = arith.constant dense<0.000000e+00> : vector<2x1xf32>
    %10 = vector.multi_reduction <add>, %9, %cst_8 [1] : vector<2x8x1xf32> to vector<2x1xf32>
    %11 = vector.shape_cast %10 : vector<2x1xf32> to vector<2x1x1xf32>
    %cst_9 = arith.constant 3.125000e-02 : f32
    %12 = vector.broadcast %cst_9 : f32 to vector<2x1x1xf32>
    %13 = arith.mulf %6, %12 : vector<2x1x1xf32>
    %cst_10 = arith.constant 3.125000e-02 : f32
    %14 = vector.broadcast %cst_10 : f32 to vector<2x1x1xf32>
    %15 = arith.mulf %11, %14 : vector<2x1x1xf32>
    %16 = arith.mulf %13, %13 : vector<2x1x1xf32>
    %17 = arith.subf %15, %16 : vector<2x1x1xf32>
    %18 = vector.broadcast %13 : vector<2x1x1xf32> to vector<2x8x4xf32>
    %19 = arith.subf %0, %18 : vector<2x8x4xf32>
    %cst_11 = arith.constant 9.99999974E-6 : f32
    %20 = vector.broadcast %cst_11 : f32 to vector<2x1x1xf32>
    %21 = arith.addf %17, %20 : vector<2x1x1xf32>
    %22 = math.rsqrt %21 : vector<2x1x1xf32>
    %23 = vector.broadcast %22 : vector<2x1x1xf32> to vector<2x8x4xf32>
    %24 = arith.mulf %19, %23 : vector<2x8x4xf32>
    %25 = vector.shape_cast %1 : vector<8x4xf32> to vector<1x8x4xf32>
    %26 = vector.broadcast %25 : vector<1x8x4xf32> to vector<2x8x4xf32>
    %27 = arith.mulf %24, %26 : vector<2x8x4xf32>
    %28 = vector.shape_cast %2 : vector<8x4xf32> to vector<1x8x4xf32>
    %29 = vector.broadcast %28 : vector<1x8x4xf32> to vector<2x8x4xf32>
    %30 = arith.addf %27, %29 : vector<2x8x4xf32>
    %31 = vector.shape_cast %30 : vector<2x8x4xf32> to vector<16x4xf32>
    %c0_12 = arith.constant 0 : index
    %c0_13 = arith.constant 0 : index
    %32 = vector.load %arg4[%c0_12, %c0_13] : memref<4x32xf32, #tpu.memory_space<vmem>>, vector<4x32xf32>
    %cst_14 = arith.constant dense<0.000000e+00> : vector<16x32xf32>
    %33 = tpu.matmul %31, %32, %cst_14 {dimension_numbers = #tpu.dot_dimension_numbers<[1], [0], [0], [1], [0, 0, 1, 1], [], []>} : vector<16x4xf32>, vector<4x32xf32>, vector<16x32xf32> -> vector<16x32xf32>
    %cst_15 = arith.constant 3.000000e+00 : f32
    %34 = vector.broadcast %cst_15 : f32 to vector<16x32xf32>
    %35 = arith.addf %33, %34 : vector<16x32xf32>
    %cst_16 = arith.constant 0.000000e+00 : f32
    %cst_17 = arith.constant 6.000000e+00 : f32
    %36 = vector.broadcast %cst_16 : f32 to vector<16x32xf32>
    %37 = arith.maximumf %36, %35 : vector<16x32xf32>
    %38 = vector.broadcast %cst_17 : f32 to vector<16x32xf32>
    %39 = arith.minimumf %38, %37 : vector<16x32xf32>
    %40 = arith.mulf %33, %39 : vector<16x32xf32>
    %c0_18 = arith.constant 0 : index
    %c0_19 = arith.constant 0 : index
    %41 = vector.load %arg5[%c0_18, %c0_19] : memref<32x4xf32, #tpu.memory_space<vmem>>, vector<32x4xf32>
    %cst_20 = arith.constant dense<0.000000e+00> : vector<16x4xf32>
    %42 = tpu.matmul %40, %41, %cst_20 {dimension_numbers = #tpu.dot_dimension_numbers<[1], [0], [0], [1], [0, 0, 1, 1], [], []>} : vector<16x32xf32>, vector<32x4xf32>, vector<16x4xf32> -> vector<16x4xf32>
    %43 = vector.shape_cast %0 : vector<2x8x4xf32> to vector<16x4xf32>
    %44 = arith.addf %43, %42 : vector<16x4xf32>
    %45 = vector.shape_cast %44 : vector<16x4xf32> to vector<2x8x4xf32>
    %c0_21 = arith.constant 0 : index
    %c0_22 = arith.constant 0 : index
    %46 = vector.load %arg6[%c0_21, %c0_22] : memref<8x4xf32, #tpu.memory_space<vmem>>, vector<8x4xf32>
    %c0_23 = arith.constant 0 : index
    %c0_24 = arith.constant 0 : index
    %47 = vector.load %arg7[%c0_23, %c0_24] : memref<8x4xf32, #tpu.memory_space<vmem>>, vector<8x4xf32>
    %cst_25 = arith.constant dense<0.000000e+00> : vector<2x8xf32>
    %48 = vector.multi_reduction <add>, %45, %cst_25 [2] : vector<2x8x4xf32> to vector<2x8xf32>
    %49 = vector.shape_cast %48 : vector<2x8xf32> to vector<2x8x1xf32>
    %cst_26 = arith.constant dense<0.000000e+00> : vector<2x1xf32>
    %50 = vector.multi_reduction <add>, %49, %cst_26 [1] : vector<2x8x1xf32> to vector<2x1xf32>
    %51 = vector.shape_cast %50 : vector<2x1xf32> to vector<2x1x1xf32>
    %52 = arith.mulf %45, %45 : vector<2x8x4xf32>
    %cst_27 = arith.constant dense<0.000000e+00> : vector<2x8xf32>
    %53 = vector.multi_reduction <add>, %52, %cst_27 [2] : vector<2x8x4xf32> to vector<2x8xf32>
    %54 = vector.shape_cast %53 : vector<2x8xf32> to vector<2x8x1xf32>
    %cst_28 = arith.constant dense<0.000000e+00> : vector<2x1xf32>
    %55 = vector.multi_reduction <add>, %54, %cst_28 [1] : vector<2x8x1xf32> to vector<2x1xf32>
    %56 = vector.shape_cast %55 : vector<2x1xf32> to vector<2x1x1xf32>
    %cst_29 = arith.constant 3.125000e-02 : f32
    %57 = vector.broadcast %cst_29 : f32 to vector<2x1x1xf32>
    %58 = arith.mulf %51, %57 : vector<2x1x1xf32>
    %cst_30 = arith.constant 3.125000e-02 : f32
    %59 = vector.broadcast %cst_30 : f32 to vector<2x1x1xf32>
    %60 = arith.mulf %56, %59 : vector<2x1x1xf32>
    %61 = arith.mulf %58, %58 : vector<2x1x1xf32>
    %62 = arith.subf %60, %61 : vector<2x1x1xf32>
    %63 = vector.broadcast %58 : vector<2x1x1xf32> to vector<2x8x4xf32>
    %64 = arith.subf %45, %63 : vector<2x8x4xf32>
    %cst_31 = arith.constant 9.99999974E-6 : f32
    %65 = vector.broadcast %cst_31 : f32 to vector<2x1x1xf32>
    %66 = arith.addf %62, %65 : vector<2x1x1xf32>
    %67 = math.rsqrt %66 : vector<2x1x1xf32>
    %68 = vector.broadcast %67 : vector<2x1x1xf32> to vector<2x8x4xf32>
    %69 = arith.mulf %64, %68 : vector<2x8x4xf32>
    %70 = vector.shape_cast %46 : vector<8x4xf32> to vector<1x8x4xf32>
    %71 = vector.broadcast %70 : vector<1x8x4xf32> to vector<2x8x4xf32>
    %72 = arith.mulf %69, %71 : vector<2x8x4xf32>
    %73 = vector.shape_cast %47 : vector<8x4xf32> to vector<1x8x4xf32>
    %74 = vector.broadcast %73 : vector<1x8x4xf32> to vector<2x8x4xf32>
    %75 = arith.addf %72, %74 : vector<2x8x4xf32>
    %c0_32 = arith.constant 0 : index
    %c0_33 = arith.constant 0 : index
    %76 = vector.load %arg8[%c0_32, %c0_33] : memref<16x16xf32, #tpu.memory_space<vmem>>, vector<16x16xf32>
    %77 = vector.shape_cast %75 : vector<2x8x4xf32> to vector<16x4xf32>
    %cst_34 = arith.constant dense<0.000000e+00> : vector<16x4xf32>
    %78 = tpu.matmul %76, %77, %cst_34 {dimension_numbers = #tpu.dot_dimension_numbers<[1], [0], [0], [1], [0, 0, 1, 1], [], []>} : vector<16x16xf32>, vector<16x4xf32>, vector<16x4xf32> -> vector<16x4xf32>
    %cst_35 = arith.constant 3.000000e+00 : f32
    %79 = vector.broadcast %cst_35 : f32 to vector<16x4xf32>
    %80 = arith.addf %78, %79 : vector<16x4xf32>
    %cst_36 = arith.constant 0.000000e+00 : f32
    %cst_37 = arith.constant 6.000000e+00 : f32
    %81 = vector.broadcast %cst_36 : f32 to vector<16x4xf32>
    %82 = arith.maximumf %81, %80 : vector<16x4xf32>
    %83 = vector.broadcast %cst_37 : f32 to vector<16x4xf32>
    %84 = arith.minimumf %83, %82 : vector<16x4xf32>
    %85 = arith.mulf %78, %84 : vector<16x4xf32>
    %c0_38 = arith.constant 0 : index
    %c0_39 = arith.constant 0 : index
    %86 = vector.load %arg10[%c0_38, %c0_39] : memref<1x4xf32, #tpu.memory_space<vmem>>, vector<1x4xf32>
    %87 = vector.shape_cast %85 : vector<16x4xf32> to vector<2x8x4xf32>
    %88 = vector.shape_cast %86 : vector<1x4xf32> to vector<1x1x4xf32>
    %89 = vector.broadcast %88 : vector<1x1x4xf32> to vector<2x8x4xf32>
    %90 = arith.mulf %87, %89 : vector<2x8x4xf32>
    %cst_40 = arith.constant dense<0.000000e+00> : vector<2x8xf32>
    %91 = vector.multi_reduction <add>, %90, %cst_40 [2] : vector<2x8x4xf32> to vector<2x8xf32>
    %92 = vector.shape_cast %86 : vector<1x4xf32> to vector<1x1x4xf32>
    %93 = vector.broadcast %92 : vector<1x1x4xf32> to vector<2x8x4xf32>
    %94 = arith.mulf %45, %93 : vector<2x8x4xf32>
    %cst_41 = arith.constant dense<0.000000e+00> : vector<2x8xf32>
    %95 = vector.multi_reduction <add>, %94, %cst_41 [2] : vector<2x8x4xf32> to vector<2x8xf32>
    %c0_42 = arith.constant 0 : index
    %c0_43 = arith.constant 0 : index
    %96 = vector.load %arg9[%c0_42, %c0_43] : memref<8x8xf32, #tpu.memory_space<vmem>>, vector<8x8xf32>
    %cst_44 = arith.constant dense<0.000000e+00> : vector<2x8xf32>
    %97 = tpu.matmul %91, %96, %cst_44 {dimension_numbers = #tpu.dot_dimension_numbers<[1], [0], [0], [1], [0, 0, 1, 1], [], []>} : vector<2x8xf32>, vector<8x8xf32>, vector<2x8xf32> -> vector<2x8xf32>
    %98 = arith.addf %95, %97 : vector<2x8xf32>
    %c0_45 = arith.constant 0 : index
    %99 = memref.load %arg11[%c0_45] : memref<1xf32, #tpu.memory_space<smem>>
    %100 = vector.broadcast %99 : f32 to vector<2x8xf32>
    %101 = arith.addf %98, %100 : vector<2x8xf32>
    %c0_46 = arith.constant 0 : index
    %c0_47 = arith.constant 0 : index
    %102 = vector.load %arg12[%c0_46, %c0_47] : memref<2x8xf32, #tpu.memory_space<vmem>>, vector<2x8xf32>
    tpu.vector_store %arg12[%c0_46, %c0_47], %101 {strides = array<i32>} : memref<2x8xf32, #tpu.memory_space<vmem>>, vector<2x8xf32>,
    return
  }
  func.func @transform_0(%arg0: i32) -> (i32, i32, i32) {
    %c0_i32 = arith.constant 0 : i32
    %c0_i32_0 = arith.constant 0 : i32
    %c0_i32_1 = arith.constant 0 : i32
    return %arg0, %c0_i32, %c0_i32_0 : i32, i32, i32
  }
  func.func @transform_1(%arg0: i32) -> (i32, i32) {
    %c0_i32 = arith.constant 0 : i32
    %c0_i32_0 = arith.constant 0 : i32
    %c0_i32_1 = arith.constant 0 : i32
    return %c0_i32, %c0_i32_0 : i32, i32
  }
  func.func @transform_2(%arg0: i32) -> (i32, i32) {
    %c0_i32 = arith.constant 0 : i32
    %c0_i32_0 = arith.constant 0 : i32
    %c0_i32_1 = arith.constant 0 : i32
    return %c0_i32, %c0_i32_0 : i32, i32
  }
  func.func @transform_3(%arg0: i32) -> (i32, i32) {
    %c0_i32 = arith.constant 0 : i32
    %c0_i32_0 = arith.constant 0 : i32
    %c0_i32_1 = arith.constant 0 : i32
    return %c0_i32, %c0_i32_0 : i32, i32
  }
  func.func @transform_4(%arg0: i32) -> (i32, i32) {
    %c0_i32 = arith.constant 0 : i32
    %c0_i32_0 = arith.constant 0 : i32
    %c0_i32_1 = arith.constant 0 : i32
    return %c0_i32, %c0_i32_0 : i32, i32
  }
  func.func @transform_5(%arg0: i32) -> (i32, i32) {
    %c0_i32 = arith.constant 0 : i32
    %c0_i32_0 = arith.constant 0 : i32
    %c0_i32_1 = arith.constant 0 : i32
    return %c0_i32, %c0_i32_0 : i32, i32
  }
  func.func @transform_6(%arg0: i32) -> (i32, i32) {
    %c0_i32 = arith.constant 0 : i32
    %c0_i32_0 = arith.constant 0 : i32
    %c0_i32_1 = arith.constant 0 : i32
    return %c0_i32, %c0_i32_0 : i32, i32
  }
  func.func @transform_7(%arg0: i32) -> (i32, i32) {
    %c0_i32 = arith.constant 0 : i32
    %c0_i32_0 = arith.constant 0 : i32
    %c0_i32_1 = arith.constant 0 : i32
    return %c0_i32, %c0_i32_0 : i32, i32
  }
  func.func @transform_8(%arg0: i32) -> (i32, i32) {
    %c0_i32 = arith.constant 0 : i32
    %c0_i32_0 = arith.constant 0 : i32
    %c0_i32_1 = arith.constant 0 : i32
    return %c0_i32, %c0_i32_0 : i32, i32
  }
  func.func @transform_9(%arg0: i32) -> (i32, i32) {
    %c0_i32 = arith.constant 0 : i32
    %c0_i32_0 = arith.constant 0 : i32
    %c0_i32_1 = arith.constant 0 : i32
    return %c0_i32, %c0_i32_0 : i32, i32
  }
  func.func @transform_10(%arg0: i32) -> i32 {
    %c0_i32 = arith.constant 0 : i32
    %c0_i32_0 = arith.constant 0 : i32
    return %c0_i32 : i32
  }
  func.func @transform_11(%arg0: i32) -> (i32, i32) {
    %c0_i32 = arith.constant 0 : i32
    %c0_i32_0 = arith.constant 0 : i32
    return %arg0, %c0_i32 : i32, i32
  }
}

</mosaic_0001>

<llo_original>
// kernel: tpu_custom_call.1
$region0: #{tpu_custom_call.1}
  #allocation0 [shape = 'u32[]', space=smem, size = 0x4, offset = 0x4, fixed_abs, tag = 'smem constant byte address 0x4 - core index']
  #allocation1 [shape = 'u32[144,128]{1,0:T(1,128)}', space=vmem, size = 0x12000, scoped, tag = 'internal scratch']
  #allocation2 [shape = 'f32[1]{0:T(128)S(6)}', space=smem, size = 0x200, scoped, tag = 'scoped memory for tpu_custom_call.1']
  %s0 = inlined_call_operand.vmem [shape: f32[2,8,4], index: 0, kind: input, shape index: {}]
  %s1 = inlined_call_operand.vmem [shape: f32[8,4], index: 1, kind: input, shape index: {}]
  %s2 = inlined_call_operand.vmem [shape: f32[8,4], index: 2, kind: input, shape index: {}]
  %s3 = inlined_call_operand.vmem [shape: f32[4,32], index: 3, kind: input, shape index: {}]
  %s4 = inlined_call_operand.vmem [shape: f32[32,4], index: 4, kind: input, shape index: {}]
  %s5 = inlined_call_operand.vmem [shape: f32[8,4], index: 5, kind: input, shape index: {}]
  %s6 = inlined_call_operand.vmem [shape: f32[8,4], index: 6, kind: input, shape index: {}]
  %s7 = inlined_call_operand.vmem [shape: f32[16,16], index: 7, kind: input, shape index: {}]
  %s8 = inlined_call_operand.vmem [shape: f32[8,8], index: 8, kind: input, shape index: {}]
  %s9 = inlined_call_operand.vmem [shape: f32[1,4], index: 9, kind: input, shape index: {}]
  %s10 = inlined_call_operand.<no memory space> [shape: f32[1], index: 10, kind: input, shape index: {}]
  %s11 = inlined_call_operand.hbm [shape: f32[2,8], index: 11, kind: output, shape index: {}]
  %s12 = sld [smem:[#allocation0]]
  $region54: #{tpu_custom_call.1} parent=0
    _
  %s14 = ssub.s32 1, %s12
  %s15 = scalar_select 0, %s14, %s12
  %16 = sst [smem:[#allocation2]] %s10
  $region1: #{tpu_custom_call.1} parent=0
    #allocation3 [shape = 'u8[1024]{0}', space=vmem, size = 0x400, scoped, tag = 'output window, operand 0, single buffered']
    #allocation4 [shape = 's32[1]{0}', space=sflag, size = 0x4, scoped, tag = 'scoped memory for tpu_custom_call.1']
    %17 = vsyncpa [#allocation4], 0
    // Predicated region
    $region2: #{tpu_custom_call.1} parent=1 // pred_check
      _
    $region3: #{tpu_custom_call.1} parent=1 // pred_check_branch
      %19 = sbr.rel (0) target = $region5
    $region4: #{tpu_custom_call.1} parent=1 // pred_region
      _
    $region5: #{tpu_custom_call.1} parent=1 // pred_fallthru
      _
    // Predicated region
    $region6: #{tpu_custom_call.1} parent=1 // pred_check
      _
    $region7: #{tpu_custom_call.1} parent=1 // pred_check_branch
      %21 = sbr.rel (0) target = $region9
    $region8: #{tpu_custom_call.1} parent=1 // pred_region
      _
    $region9: #{tpu_custom_call.1} parent=1 // pred_fallthru
      _
    // Predicated region
    $region10: #{tpu_custom_call.1} parent=1 // pred_check
      _
    $region11: #{tpu_custom_call.1} parent=1 // pred_check_branch
      %23 = sbr.rel (0) target = $region13
    $region12: #{tpu_custom_call.1} parent=1 // pred_region
      _
    $region13: #{tpu_custom_call.1} parent=1 // pred_fallthru
      _
    // Predicated region
    $region14: #{tpu_custom_call.1} parent=1 // pred_check
      _
    $region15: #{tpu_custom_call.1} parent=1 // pred_check_branch
      %25 = sbr.rel (0) target = $region17
    $region16: #{tpu_custom_call.1} parent=1 // pred_region
      _
    $region17: #{tpu_custom_call.1} parent=1 // pred_fallthru
      _
    // Predicated region
    $region18: #{tpu_custom_call.1} parent=1 // pred_check
      _
    $region19: #{tpu_custom_call.1} parent=1 // pred_check_branch
      %27 = sbr.rel (0) target = $region21
    $region20: #{tpu_custom_call.1} parent=1 // pred_region
      _
    $region21: #{tpu_custom_call.1} parent=1 // pred_fallthru
      _
    // Predicated region
    $region22: #{tpu_custom_call.1} parent=1 // pred_check
      _
    $region23: #{tpu_custom_call.1} parent=1 // pred_check_branch
      %29 = sbr.rel (0) target = $region25
    $region24: #{tpu_custom_call.1} parent=1 // pred_region
      _
    $region25: #{tpu_custom_call.1} parent=1 // pred_fallthru
      _
    // Predicated region
    $region26: #{tpu_custom_call.1} parent=1 // pred_check
      _
    $region27: #{tpu_custom_call.1} parent=1 // pred_check_branch
      %31 = sbr.rel (0) target = $region29
    $region28: #{tpu_custom_call.1} parent=1 // pred_region
      _
    $region29: #{tpu_custom_call.1} parent=1 // pred_fallthru
      _
    // Predicated region
    $region30: #{tpu_custom_call.1} parent=1 // pred_check
      _
    $region31: #{tpu_custom_call.1} parent=1 // pred_check_branch
      %33 = sbr.rel (0) target = $region33
    $region32: #{tpu_custom_call.1} parent=1 // pred_region
      _
    $region33: #{tpu_custom_call.1} parent=1 // pred_fallthru
      _
    // Predicated region
    $region34: #{tpu_custom_call.1} parent=1 // pred_check
      _
    $region35: #{tpu_custom_call.1} parent=1 // pred_check_branch
      %35 = sbr.rel (0) target = $region37
    $region36: #{tpu_custom_call.1} parent=1 // pred_region
      _
    $region37: #{tpu_custom_call.1} parent=1 // pred_fallthru
      _
    // Predicated region
    $region38: #{tpu_custom_call.1} parent=1 // pred_check
      _
    $region39: #{tpu_custom_call.1} parent=1 // pred_check_branch
      %37 = sbr.rel (0) target = $region41
    $region40: #{tpu_custom_call.1} parent=1 // pred_region
      _
    $region41: #{tpu_custom_call.1} parent=1 // pred_fallthru
      _
    // Predicated region
    $region42: #{tpu_custom_call.1} parent=1 // pred_check
      _
    $region43: #{tpu_custom_call.1} parent=1 // pred_check_branch
      %39 = sbr.rel (0) target = $region45
    $region44: #{tpu_custom_call.1} parent=1 // pred_region
      _
    $region45: #{tpu_custom_call.1} parent=1 // pred_fallthru
      _
    %v40 = vld [vmem:[%s0] sm:$0xff]
    %v41 = vld [vmem:[%s0 + $0x8] sm:$0xff]
    %v42 = vld [vmem:[%s1] sm:$0xff]
    %v43 = vld [vmem:[%s2] sm:$0xff]
    %vm44 = vcmask 31744
    %v45 = vsel %vm44, %v40, 0.0
    %46 = vadd.xlane.f32.xlu0 %v45
    %v47 = vpop.xlane.xlu0 %46
    %v48 = vsel %vm44, %v41, 0.0
    %49 = vadd.xlane.f32.xlu0 %v48
    %v50 = vpop.xlane.xlu0 %49
    %v51 = vrot.slane %v47, 4
    %v52 = vadd.f32 %v47, %v51
    %v53 = vrot.slane %v52, 2
    %v54 = vadd.f32 %v52, %v53
    %v55 = vrot.slane %v54, 1
    %v56 = vadd.f32 %v54, %v55
    %v57 = vrot.slane %v50, 4
    %v58 = vadd.f32 %v50, %v57
    %v59 = vrot.slane %v58, 2
    %v60 = vadd.f32 %v58, %v59
    %v61 = vrot.slane %v60, 1
    %v62 = vadd.f32 %v60, %v61
    %v63 = vmul.f32 %v40, %v40
    %v64 = vmul.f32 %v41, %v41
    %v65 = vsel %vm44, %v63, 0.0
    %66 = vadd.xlane.f32.xlu0 %v65
    %v67 = vpop.xlane.xlu0 %66
    %v68 = vsel %vm44, %v64, 0.0
    %69 = vadd.xlane.f32.xlu0 %v68
    %v70 = vpop.xlane.xlu0 %69
    %v71 = vrot.slane %v67, 4
    %v72 = vadd.f32 %v67, %v71
    %v73 = vrot.slane %v72, 2
    %v74 = vadd.f32 %v72, %v73
    %v75 = vrot.slane %v74, 1
    %v76 = vadd.f32 %v74, %v75
    %v77 = vrot.slane %v70, 4
    %v78 = vadd.f32 %v70, %v77
    %v79 = vrot.slane %v78, 2
    %v80 = vadd.f32 %v78, %v79
    %v81 = vrot.slane %v80, 1
    %v82 = vadd.f32 %v80, %v81
    %v83 = vmul.f32 %v56, 0.03125
    %v84 = vmul.f32 %v62, 0.03125
    %v85 = vmul.f32 %v76, 0.03125
    %v86 = vmul.f32 %v82, 0.03125
    %v87 = vmul.f32 %v83, %v83
    %v88 = vmul.f32 %v84, %v84
    %v89 = vsub.f32 %v85, %v87
    %v90 = vsub.f32 %v86, %v88
    %v91 = vsub.f32 %v40, %v83
    %v92 = vsub.f32 %v41, %v84
    %v93 = vadd.f32 %v89, 1e-05
    %v94 = vadd.f32 %v90, 1e-05
    %v95 = vrsqrt.pop %v93
    %v96 = vrsqrt.pop %v94
    %v97 = vmul.f32 %v91, %v95
    %v98 = vmul.f32 %v92, %v96
    %v99 = vmul.f32 %v97, %v42
    %v100 = vmul.f32 %v98, %v42
    %v101 = vadd.f32 %v99, %v43
    %v102 = vadd.f32 %v100, %v43
    %v103 = vld [vmem:[%s3] sm:$0xf]
    %v105 = vsel %vm44, %v101, 0
    %v108 = vsel %vm44, %v102, 0
    %vm110 = vcmask 1043456
    %v112 = vsel %vm110, %v103, 0
    %114 = vmatprep.subr.mxu0 0.0
    %115 = vmatpush1.msra.mxu0 0.0
    %116 = vmatprep.subr.mxu0 0.0
    %117 = vmatpush1.msra.mxu0 0.0
    %118 = vmatprep.subr.mxu0 0.0
    %119 = vmatpush1.msra.mxu0 0.0
    %120 = vmatprep.subr.mxu0 0.0
    %121 = vmatpush1.msra.mxu0 0.0
    %122 = vmatprep.subr.mxu0 0.0
    %123 = vmatpush1.msra.mxu0 0.0
    %124 = vmatprep.subr.mxu0 0.0
    %125 = vmatpush1.msra.mxu0 0.0
    %126 = vmatprep.subr.mxu0 0.0
    %127 = vmatpush1.msra.mxu0 0.0
    %128 = vmatprep.subr.mxu0 0.0
    %129 = vmatpush1.msra.mxu0 0.0
    %130 = vmatprep.subr.mxu0 0.0
    %131 = vmatpush1.msra.mxu0 0.0
    %132 = vmatprep.subr.mxu0 0.0
    %133 = vmatpush1.msra.mxu0 0.0
    %134 = vmatprep.subr.mxu0 0.0
    %135 = vmatpush1.msra.mxu0 0.0
    %136 = vmatprep.subr.mxu0 0.0
    %137 = vmatpush1.msra.mxu0 0.0
    %138 = vmatprep.subr.mxu0 0.0
    %139 = vmatpush1.msra.mxu0 0.0
    %140 = vmatprep.subr.mxu0 0.0
    %141 = vmatpush1.msra.mxu0 0.0
    %142 = vmatprep.subr.mxu0 0.0
    %143 = vmatpush1.msra.mxu0 0.0
    %144 = vmatprep.subr.mxu0 0.0
    %145 = vmatpush1.msra.mxu0 %v112
    %146 = vmatprep.subr.mxu0 0.0
    %147 = vmatpush2.msra.mxu0 0.0
    %148 = vmatprep.subr.mxu0 0.0
    %149 = vmatpush2.msra.mxu0 0.0
    %150 = vmatprep.subr.mxu0 0.0
    %151 = vmatpush2.msra.mxu0 0.0
    %152 = vmatprep.subr.mxu0 0.0
    %153 = vmatpush2.msra.mxu0 0.0
    %154 = vmatprep.subr.mxu0 0.0
    %155 = vmatpush2.msra.mxu0 0.0
    %156 = vmatprep.subr.mxu0 0.0
    %157 = vmatpush2.msra.mxu0 0.0
    %158 = vmatprep.subr.mxu0 0.0
    %159 = vmatpush2.msra.mxu0 0.0
    %160 = vmatprep.subr.mxu0 0.0
    %161 = vmatpush2.msra.mxu0 0.0
    %162 = vmatprep.subr.mxu0 0.0
    %163 = vmatpush2.msra.mxu0 0.0
    %164 = vmatprep.subr.mxu0 0.0
    %165 = vmatpush2.msra.mxu0 0.0
    %166 = vmatprep.subr.mxu0 0.0
    %167 = vmatpush2.msra.mxu0 0.0
    %168 = vmatprep.subr.mxu0 0.0
    %169 = vmatpush2.msra.mxu0 0.0
    %170 = vmatprep.subr.mxu0 0.0
    %171 = vmatpush2.msra.mxu0 0.0
    %172 = vmatprep.subr.mxu0 0.0
    %173 = vmatpush2.msra.mxu0 0.0
    %174 = vmatprep.subr.mxu0 0.0
    %175 = vmatpush2.msra.mxu0 0.0
    %176 = vmatprep.subr.mxu0 0.0
    %177 = vmatpush2.msra.mxu0 0.0
    %178 = vmatprep.mubr.f32.mxu0 0.0
    %179 = vmatmul.mubr.f32.gmra.mxu0 %v105
    %v180 = vpop.f32.mrf.mxu0
    %v181 = vadd.f32 0.0, %v180
    %v182 = vpop.f32.mrf.mxu0
    %183 = vmatprep.mubr.f32.mxu0 0.0
    %184 = vmatmul.mubr.f32.gmra.mxu0 %v108
    %v185 = vpop.f32.mrf.mxu0
    %v186 = vadd.f32 0.0, %v185
    %v187 = vpop.f32.mrf.mxu0
    %188 = vdwg.mxu0
    %v189 = vadd.f32 %v181, 3.0
    %v190 = vadd.f32 %v186, 3.0
    %v191 = vmax.f32 %v189, 0.0
    %v192 = vmax.f32 %v190, 0.0
    %v193 = vmin.f32 %v191, 6.0
    %v194 = vmin.f32 %v192, 6.0
    %v195 = vmul.f32 %v181, %v193
    %v196 = vmul.f32 %v186, %v194
    %v197 = vld [vmem:[%s4] sm:$0xff]
    %v198 = vld [vmem:[%s4 + $0x8] sm:$0xff]
    %v199 = vld [vmem:[%s4 + $0x10] sm:$0xff]
    %v200 = vld [vmem:[%s4 + $0x18] sm:$0xff]
    %vm201 = vcmask 261120
    %v203 = vsel %vm201, %v195, 0
    %v206 = vsel %vm201, %v196, 0
    %208 = vmatprep.subr.mxu0 0.0
    %209 = vmatpush1.msra.mxu0 0.0
    %210 = vmatprep.subr.mxu0 0.0
    %211 = vmatpush1.msra.mxu0 0.0
    %212 = vmatprep.subr.mxu0 0.0
    %213 = vmatpush1.msra.mxu0 0.0
    %214 = vmatprep.subr.mxu0 0.0
    %215 = vmatpush1.msra.mxu0 0.0
    %216 = vmatprep.subr.mxu0 0.0
    %217 = vmatpush1.msra.mxu0 0.0
    %218 = vmatprep.subr.mxu0 0.0
    %219 = vmatpush1.msra.mxu0 0.0
    %220 = vmatprep.subr.mxu0 0.0
    %221 = vmatpush1.msra.mxu0 0.0
    %222 = vmatprep.subr.mxu0 0.0
    %223 = vmatpush1.msra.mxu0 0.0
    %224 = vmatprep.subr.mxu0 0.0
    %225 = vmatpush1.msra.mxu0 0.0
    %226 = vmatprep.subr.mxu0 0.0
    %227 = vmatpush1.msra.mxu0 0.0
    %228 = vmatprep.subr.mxu0 0.0
    %229 = vmatpush1.msra.mxu0 0.0
    %230 = vmatprep.subr.mxu0 0.0
    %231 = vmatpush1.msra.mxu0 0.0
    %232 = vmatprep.subr.mxu0 0.0
    %233 = vmatpush1.msra.mxu0 %v200
    %234 = vmatprep.subr.mxu0 0.0
    %235 = vmatpush1.msra.mxu0 %v199
    %236 = vmatprep.subr.mxu0 0.0
    %237 = vmatpush1.msra.mxu0 %v198
    %238 = vmatprep.subr.mxu0 0.0
    %239 = vmatpush1.msra.mxu0 %v197
    %240 = vmatprep.subr.mxu0 0.0
    %241 = vmatpush2.msra.mxu0 0.0
    %242 = vmatprep.subr.mxu0 0.0
    %243 = vmatpush2.msra.mxu0 0.0
    %244 = vmatprep.subr.mxu0 0.0
    %245 = vmatpush2.msra.mxu0 0.0
    %246 = vmatprep.subr.mxu0 0.0
    %247 = vmatpush2.msra.mxu0 0.0
    %248 = vmatprep.subr.mxu0 0.0
    %249 = vmatpush2.msra.mxu0 0.0
    %250 = vmatprep.subr.mxu0 0.0
    %251 = vmatpush2.msra.mxu0 0.0
    %252 = vmatprep.subr.mxu0 0.0
    %253 = vmatpush2.msra.mxu0 0.0
    %254 = vmatprep.subr.mxu0 0.0
    %255 = vmatpush2.msra.mxu0 0.0
    %256 = vmatprep.subr.mxu0 0.0
    %257 = vmatpush2.msra.mxu0 0.0
    %258 = vmatprep.subr.mxu0 0.0
    %259 = vmatpush2.msra.mxu0 0.0
    %260 = vmatprep.subr.mxu0 0.0
    %261 = vmatpush2.msra.mxu0 0.0
    %262 = vmatprep.subr.mxu0 0.0
    %263 = vmatpush2.msra.mxu0 0.0
    %264 = vmatprep.subr.mxu0 0.0
    %265 = vmatpush2.msra.mxu0 0.0
    %266 = vmatprep.subr.mxu0 0.0
    %267 = vmatpush2.msra.mxu0 0.0
    %268 = vmatprep.subr.mxu0 0.0
    %269 = vmatpush2.msra.mxu0 0.0
    %270 = vmatprep.subr.mxu0 0.0
    %271 = vmatpush2.msra.mxu0 0.0
    %272 = vmatprep.mubr.f32.mxu0 0.0
    %273 = vmatmul.mubr.f32.gmra.mxu0 %v203
    %v274 = vpop.f32.mrf.mxu0
    %v275 = vadd.f32 0.0, %v274
    %v276 = vpop.f32.mrf.mxu0
    %277 = vmatprep.mubr.f32.mxu0 0.0
    %278 = vmatmul.mubr.f32.gmra.mxu0 %v206
    %v279 = vpop.f32.mrf.mxu0
    %v280 = vadd.f32 0.0, %v279
    %v281 = vpop.f32.mrf.mxu0
    %282 = vdwg.mxu0
    %v283 = vadd.f32 %v40, %v275
    %v284 = vadd.f32 %v41, %v280
    %v285 = vld [vmem:[%s5] sm:$0xff]
    %v286 = vld [vmem:[%s6] sm:$0xff]
    %v287 = vsel %vm44, %v283, 0.0
    %288 = vadd.xlane.f32.xlu0 %v287
    %v289 = vpop.xlane.xlu0 %288
    %v290 = vsel %vm44, %v284, 0.0
    %291 = vadd.xlane.f32.xlu0 %v290
    %v292 = vpop.xlane.xlu0 %291
    %v293 = vrot.slane %v289, 4
    %v294 = vadd.f32 %v289, %v293
    %v295 = vrot.slane %v294, 2
    %v296 = vadd.f32 %v294, %v295
    %v297 = vrot.slane %v296, 1
    %v298 = vadd.f32 %v296, %v297
    %v299 = vrot.slane %v292, 4
    %v300 = vadd.f32 %v292, %v299
    %v301 = vrot.slane %v300, 2
    %v302 = vadd.f32 %v300, %v301
    %v303 = vrot.slane %v302, 1
    %v304 = vadd.f32 %v302, %v303
    %v305 = vmul.f32 %v283, %v283
    %v306 = vmul.f32 %v284, %v284
    %v307 = vsel %vm44, %v305, 0.0
    %308 = vadd.xlane.f32.xlu0 %v307
    %v309 = vpop.xlane.xlu0 %308
    %v310 = vsel %vm44, %v306, 0.0
    %311 = vadd.xlane.f32.xlu0 %v310
    %v312 = vpop.xlane.xlu0 %311
    %v313 = vrot.slane %v309, 4
    %v314 = vadd.f32 %v309, %v313
    %v315 = vrot.slane %v314, 2
    %v316 = vadd.f32 %v314, %v315
    %v317 = vrot.slane %v316, 1
    %v318 = vadd.f32 %v316, %v317
    %v319 = vrot.slane %v312, 4
    %v320 = vadd.f32 %v312, %v319
    %v321 = vrot.slane %v320, 2
    %v322 = vadd.f32 %v320, %v321
    %v323 = vrot.slane %v322, 1
    %v324 = vadd.f32 %v322, %v323
    %v325 = vmul.f32 %v298, 0.03125
    %v326 = vmul.f32 %v304, 0.03125
    %v327 = vmul.f32 %v318, 0.03125
    %v328 = vmul.f32 %v324, 0.03125
    %v329 = vmul.f32 %v325, %v325
    %v330 = vmul.f32 %v326, %v326
    %v331 = vsub.f32 %v327, %v329
    %v332 = vsub.f32 %v328, %v330
    %v333 = vsub.f32 %v283, %v325
    %v334 = vsub.f32 %v284, %v326
    %v335 = vadd.f32 %v331, 1e-05
    %v336 = vadd.f32 %v332, 1e-05
    %v337 = vrsqrt.pop %v335
    %v338 = vrsqrt.pop %v336
    %v339 = vmul.f32 %v333, %v337
    %v340 = vmul.f32 %v334, %v338
    %v341 = vmul.f32 %v339, %v285
    %v342 = vmul.f32 %v340, %v285
    %v343 = vadd.f32 %v341, %v286
    %v344 = vadd.f32 %v342, %v286
    %v345 = vld [vmem:[%s7] sm:$0xff]
    %v346 = vld [vmem:[%s7 + $0x8] sm:$0xff]
    %vm347 = vcmask 130048
    %v349 = vsel %vm347, %v345, 0
    %v352 = vsel %vm347, %v346, 0
    %354 = vmatprep.subr.mxu0 0.0
    %355 = vmatpush1.msra.mxu0 0.0
    %356 = vmatprep.subr.mxu0 0.0
    %357 = vmatpush1.msra.mxu0 0.0
    %358 = vmatprep.subr.mxu0 0.0
    %359 = vmatpush1.msra.mxu0 0.0
    %360 = vmatprep.subr.mxu0 0.0
    %361 = vmatpush1.msra.mxu0 0.0
    %362 = vmatprep.subr.mxu0 0.0
    %363 = vmatpush1.msra.mxu0 0.0
    %364 = vmatprep.subr.mxu0 0.0
    %365 = vmatpush1.msra.mxu0 0.0
    %366 = vmatprep.subr.mxu0 0.0
    %367 = vmatpush1.msra.mxu0 0.0
    %368 = vmatprep.subr.mxu0 0.0
    %369 = vmatpush1.msra.mxu0 0.0
    %370 = vmatprep.subr.mxu0 0.0
    %371 = vmatpush1.msra.mxu0 0.0
    %372 = vmatprep.subr.mxu0 0.0
    %373 = vmatpush1.msra.mxu0 0.0
    %374 = vmatprep.subr.mxu0 0.0
    %375 = vmatpush1.msra.mxu0 0.0
    %376 = vmatprep.subr.mxu0 0.0
    %377 = vmatpush1.msra.mxu0 0.0
    %378 = vmatprep.subr.mxu0 0.0
    %379 = vmatpush1.msra.mxu0 0.0
    %380 = vmatprep.subr.mxu0 0.0
    %381 = vmatpush1.msra.mxu0 0.0
    %382 = vmatprep.subr.mxu0 0.0
    %383 = vmatpush1.msra.mxu0 %v344
    %384 = vmatprep.subr.mxu0 0.0
    %385 = vmatpush1.msra.mxu0 %v343
    %386 = vmatprep.subr.mxu0 0.0
    %387 = vmatpush2.msra.mxu0 0.0
    %388 = vmatprep.subr.mxu0 0.0
    %389 = vmatpush2.msra.mxu0 0.0
    %390 = vmatprep.subr.mxu0 0.0
    %391 = vmatpush2.msra.mxu0 0.0
    %392 = vmatprep.subr.mxu0 0.0
    %393 = vmatpush2.msra.mxu0 0.0
    %394 = vmatprep.subr.mxu0 0.0
    %395 = vmatpush2.msra.mxu0 0.0
    %396 = vmatprep.subr.mxu0 0.0
    %397 = vmatpush2.msra.mxu0 0.0
    %398 = vmatprep.subr.mxu0 0.0
    %399 = vmatpush2.msra.mxu0 0.0
    %400 = vmatprep.subr.mxu0 0.0
    %401 = vmatpush2.msra.mxu0 0.0
    %402 = vmatprep.subr.mxu0 0.0
    %403 = vmatpush2.msra.mxu0 0.0
    %404 = vmatprep.subr.mxu0 0.0
    %405 = vmatpush2.msra.mxu0 0.0
    %406 = vmatprep.subr.mxu0 0.0
    %407 = vmatpush2.msra.mxu0 0.0
    %408 = vmatprep.subr.mxu0 0.0
    %409 = vmatpush2.msra.mxu0 0.0
    %410 = vmatprep.subr.mxu0 0.0
    %411 = vmatpush2.msra.mxu0 0.0
    %412 = vmatprep.subr.mxu0 0.0
    %413 = vmatpush2.msra.mxu0 0.0
    %414 = vmatprep.subr.mxu0 0.0
    %415 = vmatpush2.msra.mxu0 0.0
    %416 = vmatprep.subr.mxu0 0.0
    %417 = vmatpush2.msra.mxu0 0.0
    %418 = vmatprep.mubr.f32.mxu0 0.0
    %419 = vmatmul.mubr.f32.gmra.mxu0 %v349
    %v420 = vpop.f32.mrf.mxu0
    %v421 = vadd.f32 0.0, %v420
    %v422 = vpop.f32.mrf.mxu0
    %423 = vmatprep.mubr.f32.mxu0 0.0
    %424 = vmatmul.mubr.f32.gmra.mxu0 %v352
    %v425 = vpop.f32.mrf.mxu0
    %v426 = vadd.f32 0.0, %v425
    %v427 = vpop.f32.mrf.mxu0
    %428 = vdwg.mxu0
    %v429 = vadd.f32 %v421, 3.0
    %v430 = vadd.f32 %v426, 3.0
    %v431 = vmax.f32 %v429, 0.0
    %v432 = vmax.f32 %v430, 0.0
    %v433 = vmin.f32 %v431, 6.0
    %v434 = vmin.f32 %v432, 6.0
    %v435 = vmul.f32 %v421, %v433
    %v436 = vmul.f32 %v426, %v434
    %v437 = vld [vmem:[%s9] sm:$0x1]
    %v439 = vlaneseq
    %v440 = vshrl.u32 %v439, 7
    %v441 = vsub.s32 0, %v440
    %v442 = vrot.slane %v437, %v441
    %v444 = vmul.f32 %v435, %v442
    %v445 = vmul.f32 %v436, %v442
    %v446 = vsel %vm44, %v444, 0.0
    %447 = vadd.xlane.f32.xlu0 %v446
    %v448 = vpop.xlane.xlu0 %447
    %v449 = vsel %vm44, %v445, 0.0
    %450 = vadd.xlane.f32.xlu0 %v449
    %v451 = vpop.xlane.xlu0 %450
    %v452 = vmul.f32 %v283, %v442
    %v453 = vmul.f32 %v284, %v442
    %v454 = vsel %vm44, %v452, 0.0
    %455 = vadd.xlane.f32.xlu0 %v454
    %v456 = vpop.xlane.xlu0 %455
    %v457 = vsel %vm44, %v453, 0.0
    %458 = vadd.xlane.f32.xlu0 %v457
    %v459 = vpop.xlane.xlu0 %458
    %v460 = vld [vmem:[%s8] sm:$0xff]
    %v463 = vlaneseq
    %v464 = vand.u32 %v463, 127
    %v465 = vlaneseq
    %v466 = vshrl.u32 %v465, 7
    %v467 = vsub.s32 %v464, %v466
    %v468 = vrot.slane %v448, %v467
    %v469 = vlaneseq
    %v470 = vshrl.u32 %v469, 7
    %v471 = vsub.s32 %v464, %v470
    %v472 = vrot.slane %v451, %v471
    %vm473 = vcmask 1041409
    %v474 = vsel %vm473, %v472, %v468
    %vm475 = vcmask 64512
    %v476 = vsel %vm475, %v474, 0
    %478 = vmatprep.subr.mxu0 0.0
    %479 = vmatpush1.msra.mxu0 0.0
    %480 = vmatprep.subr.mxu0 0.0
    %481 = vmatpush1.msra.mxu0 0.0
    %482 = vmatprep.subr.mxu0 0.0
    %483 = vmatpush1.msra.mxu0 0.0
    %484 = vmatprep.subr.mxu0 0.0
    %485 = vmatpush1.msra.mxu0 0.0
    %486 = vmatprep.subr.mxu0 0.0
    %487 = vmatpush1.msra.mxu0 0.0
    %488 = vmatprep.subr.mxu0 0.0
    %489 = vmatpush1.msra.mxu0 0.0
    %490 = vmatprep.subr.mxu0 0.0
    %491 = vmatpush1.msra.mxu0 0.0
    %492 = vmatprep.subr.mxu0 0.0
    %493 = vmatpush1.msra.mxu0 0.0
    %494 = vmatprep.subr.mxu0 0.0
    %495 = vmatpush1.msra.mxu0 0.0
    %496 = vmatprep.subr.mxu0 0.0
    %497 = vmatpush1.msra.mxu0 0.0
    %498 = vmatprep.subr.mxu0 0.0
    %499 = vmatpush1.msra.mxu0 0.0
    %500 = vmatprep.subr.mxu0 0.0
    %501 = vmatpush1.msra.mxu0 0.0
    %502 = vmatprep.subr.mxu0 0.0
    %503 = vmatpush1.msra.mxu0 0.0
    %504 = vmatprep.subr.mxu0 0.0
    %505 = vmatpush1.msra.mxu0 0.0
    %506 = vmatprep.subr.mxu0 0.0
    %507 = vmatpush1.msra.mxu0 0.0
    %508 = vmatprep.subr.mxu0 0.0
    %509 = vmatpush1.msra.mxu0 %v460
    %510 = vmatprep.subr.mxu0 0.0
    %511 = vmatpush2.msra.mxu0 0.0
    %512 = vmatprep.subr.mxu0 0.0
    %513 = vmatpush2.msra.mxu0 0.0
    %514 = vmatprep.subr.mxu0 0.0
    %515 = vmatpush2.msra.mxu0 0.0
    %516 = vmatprep.subr.mxu0 0.0
    %517 = vmatpush2.msra.mxu0 0.0
    %518 = vmatprep.subr.mxu0 0.0
    %519 = vmatpush2.msra.mxu0 0.0
    %520 = vmatprep.subr.mxu0 0.0
    %521 = vmatpush2.msra.mxu0 0.0
    %522 = vmatprep.subr.mxu0 0.0
    %523 = vmatpush2.msra.mxu0 0.0
    %524 = vmatprep.subr.mxu0 0.0
    %525 = vmatpush2.msra.mxu0 0.0
    %526 = vmatprep.subr.mxu0 0.0
    %527 = vmatpush2.msra.mxu0 0.0
    %528 = vmatprep.subr.mxu0 0.0
    %529 = vmatpush2.msra.mxu0 0.0
    %530 = vmatprep.subr.mxu0 0.0
    %531 = vmatpush2.msra.mxu0 0.0
    %532 = vmatprep.subr.mxu0 0.0
    %533 = vmatpush2.msra.mxu0 0.0
    %534 = vmatprep.subr.mxu0 0.0
    %535 = vmatpush2.msra.mxu0 0.0
    %536 = vmatprep.subr.mxu0 0.0
    %537 = vmatpush2.msra.mxu0 0.0
    %538 = vmatprep.subr.mxu0 0.0
    %539 = vmatpush2.msra.mxu0 0.0
    %540 = vmatprep.subr.mxu0 0.0
    %541 = vmatpush2.msra.mxu0 0.0
    %542 = vmatprep.mubr.f32.mxu0 0.0
    %543 = vmatmul.mubr.f32.gmra.mxu0 %v476
    %v544 = vpop.f32.mrf.mxu0
    %v545 = vadd.f32 0.0, %v544
    %v546 = vpop.f32.mrf.mxu0
    %547 = vdwg.mxu0
    %v549 = vlaneseq
    %v550 = vshrl.u32 %v549, 7
    %v551 = vsub.s32 0, %v550
    %v552 = vrot.slane %v545, %v551
    %554 = vbcast.lane.b32.xlu0 %v552, 256
    %v555 = vpop.permute.xlu0 %554
    %v556 = vlaneseq
    %v557 = vshrl.u32 %v556, 7
    %v558 = vsub.s32 1, %v557
    %v559 = vrot.slane %v545, %v558
    %561 = vbcast.lane.b32.xlu0 %v559, 256
    %v562 = vpop.permute.xlu0 %561
    %v565 = vadd.f32 %v456, %v555
    %v566 = vadd.f32 %v459, %v562
    %s567 = sld [smem:[#allocation2]]
    %v568 = vstv %s567
    %v569 = vadd.f32 %v565, %v568
    %v570 = vadd.f32 %v566, %v568
    %573 = vset.pattern.permute.xlu0 0
    %574 = vperm.xlu0 %573, %v569
    %v575 = vpop.permute.xlu0 %574
    %576 = vset.pattern.permute.xlu0 0
    %577 = vperm.xlu0 %576, %v570
    %v578 = vpop.permute.xlu0 %577
    %v579 = vlaneseq
    %v580 = vshrl.u32 %v579, 7
    %v581 = vsub.s32 %v464, %v580
    %v582 = vrot.slane %v575, %v581
    %v583 = vlaneseq
    %v584 = vshrl.u32 %v583, 7
    %v585 = vsub.s32 %v464, %v584
    %v586 = vrot.slane %v578, %v585
    %v587 = vsel %vm473, %v586, %v582
    %vm589 = vcmask 58368
    %590 = vst.msk [vmem:[#allocation3] sm:$0x3] %vm589, %v587
    // Predicated region
    $region46: #{tpu_custom_call.1} parent=1 // pred_check
      _
    $region47: #{tpu_custom_call.1} parent=1 // pred_check_branch
      %592 = sbr.rel (0) target = $region49
    $region48: #{tpu_custom_call.1} parent=1 // pred_region
      %s594 = ssub.s32 32, 32
      %595 = vsyncadd [#allocation4], %s594
      %s597 = sshll.u32 [#allocation3], 4
      %s598 = int_to_ptr.vmem [resolvable:$true] %s597
      %600 = dma.vmem_to_hbm [thread:$0]  %s598, 32, %s11, [#allocation4]
    $region49: #{tpu_custom_call.1} parent=1 // pred_fallthru
      _
    // Predicated region
    $region50: #{tpu_custom_call.1} parent=1 // pred_check
      _
    $region51: #{tpu_custom_call.1} parent=1 // pred_check_branch
      %602 = sbr.rel (0) target = $region53
    $region52: #{tpu_custom_call.1} parent=1 // pred_region
      %603 = dma.done [#allocation4], 32
    $region53: #{tpu_custom_call.1} parent=1 // pred_fallthru
      _
    %604 = vsyncpa [#allocation4], 1

</llo_original>
